<compile_context>
chip_gen: v7x
topology: tpu7x:2x2x1
jax: 0.10.0
libtpu: 0.0.40
codegen_flags: <defaults>
</compile_context>

<pallas_src>
import functools

import jax
import jax.numpy as jnp
from jax.experimental import pallas as pl
from jax.experimental.pallas import tpu as pltpu


def _output_layer_kernel(xT_ref, w1T_ref, w2T_ref, biasT_ref, o_ref, *, batch):
    """One grid step handles one prediction step t (lane axis = B*N throughout).

    xT_ref   : (T*C, B*N)  bf16  transposed input, resident across t
    w1T_ref  : (1, H, T*C) bf16  W1[t]^T
    w2T_ref  : (1, O, H)   bf16  W2[t]^T
    biasT_ref: (1, O, N)   f32   ((temb[t]+semb) @ W2[t])^T  (B-broadcast in-kernel)
    o_ref    : (1, O, B*N) f32
    """
    # First contraction on the MXU: (H, TC) @ (TC, B*N) -> (H, B*N), f32 accum.
    hT = jnp.dot(w1T_ref[0], xT_ref[...], preferred_element_type=jnp.float32)
    hT = jnp.maximum(hT, 0.0)                       # ReLU in f32 on the VPU
    # Second contraction kept transposed so the store stays lane-dense on B*N:
    # (O, H) @ (H, B*N) -> (O, B*N), f32 accumulation.
    outT = jnp.dot(w2T_ref[0], hT.astype(w2T_ref.dtype),
                   preferred_element_type=jnp.float32)
    # Position-embedding contribution folded through W2 in the wrapper; only the
    # tiny (O, N) table is DMA'd -- repeat it over the batch along the lane axis.
    biasT = biasT_ref[0]                            # (O, N) f32
    bias_full = jnp.concatenate([biasT] * batch, axis=-1)   # (O, B*N)
    o_ref[0] = (outT + bias_full).astype(o_ref.dtype)


def output_layer_forward(data, w1, temb, semb, w2):
    """data: (B, T, N, C); w1: (P, T*C, H); temb: (P, H); semb: (N, H); w2: (P, H, O)."""
    B, T, N, C = data.shape
    P, TC, H = w1.shape
    assert TC == T * C
    O = w2.shape[-1]
    BN = B * N

    # ---- layout / algebraic prep (plain JAX, fused under jit) ---------------
    # Transposed activations: xT[t*C + c, b*N + n] = data[b, t, n, c]
    xT = jnp.transpose(data, (1, 3, 0, 2)).reshape(TC, BN)
    # Pre-transposed weights so the kernel needs no in-kernel transposes.
    w1T = jnp.transpose(w1, (0, 2, 1))              # (P, H, TC)
    w2T = jnp.transpose(w2, (0, 2, 1))              # (P, O, H)
    # Fold the position embedding through W2 into an additive bias (exact):
    #   biasT[t, o, n] = sum_d (temb[t, d] + semb[n, d]) * w2[t, d, o]
    emb = temb[:, None, :] + semb[None, :, :]       # (P, N, H) f32
    biasT = jnp.einsum('tnd,tdo->ton', emb, w2)     # (P, O, N) f32, computed exactly
    # NOTE: bias1 / bias2 are parameters of the PyTorch module but are unused in
    # its forward pass, so they are intentionally absent here.

    # bf16 MXU operands (native on v5e/v6e/v7x); accumulation & bias stay f32.
    mxu_dtype = jnp.bfloat16
    xT_mxu = xT.astype(mxu_dtype)
    w1T_mxu = w1T.astype(mxu_dtype)
    w2T_mxu = w2T.astype(mxu_dtype)

    flops = 2 * P * BN * H * (TC + O)
    bytes_accessed = (xT_mxu.size * 2 + w1T_mxu.size * 2 + w2T_mxu.size * 2
                      + biasT.size * 4 + P * O * BN * 4)

    # ---- Pallas kernel: grid over the prediction step t ----------------------
    outT = pl.pallas_call(
        functools.partial(_output_layer_kernel, batch=B),
        out_shape=jax.ShapeDtypeStruct((P, O, BN), data.dtype),
        grid=(P,),
        in_specs=[
            pl.BlockSpec((TC, BN), lambda t: (0, 0)),       # xT, resident across t
            pl.BlockSpec((1, H, TC), lambda t: (t, 0, 0)),  # W1[t]^T
            pl.BlockSpec((1, O, H), lambda t: (t, 0, 0)),   # W2[t]^T
            pl.BlockSpec((1, O, N), lambda t: (t, 0, 0)),   # bias[t] (no B tiling)
        ],
        out_specs=pl.BlockSpec((1, O, BN), lambda t: (t, 0, 0)),
        compiler_params=pltpu.CompilerParams(
            # prediction steps are independent -> megacore-shardable on v7x
            dimension_semantics=("parallel",)),
        cost_estimate=pl.CostEstimate(flops=flops, transcendentals=0,
                                      bytes_accessed=bytes_accessed),
    )(xT_mxu, w1T_mxu, w2T_mxu, biasT)

    # outT[t, o, b*N + n] -> (B, P, N, O)
    return outT.reshape(P, O, B, N).transpose(2, 0, 3, 1)


def _reference(data, w1, temb, semb, w2):
    """Pure-JAX f32 reference mirroring the PyTorch forward."""
    B, T, N, C = data.shape
    P, _, H = w1.shape
    x = jnp.swapaxes(data, 1, 2).reshape(B, N, T * C)
    h = jax.nn.relu(jnp.einsum('bnc,tcd->bntd', x, w1))
    h = jnp.swapaxes(h, 1, 2)                                 # (B, P, N, H)
    h = h + temb.reshape(1, P, 1, H) + semb.reshape(1, 1, N, H)
    return jnp.einsum('btnd,tdc->btnc', h, w2)


if __name__ == "__main__":
    # Small shapes consistent with the module.
    B = 2                    # batch
    T = 4                    # input_length
    N = 8                    # num_of_vertices
    C = 4                    # num_of_features
    P = 2                    # predict_length
    H = 32                   # num_of_hidden
    O = 1                    # num_of_output

    key = jax.random.PRNGKey(0)
    kd, k1, k2, kt, ks = jax.random.split(key, 5)

    data = jax.random.normal(kd, (B, T, N, C), dtype=jnp.float32)

    # Deterministic synthetic parameter init (xavier-normal-like, gain=3e-4,
    # matching the module's parameter shapes).
    def xavier_normal(k, shape, gain=3e-4):
        fan_in = shape[-2] if len(shape) >= 2 else shape[-1]
        fan_out = shape[-1]
        std = gain * (2.0 / (fan_in + fan_out)) ** 0.5
        return std * jax.random.normal(k, shape, dtype=jnp.float32)

    w1 = xavier_normal(k1, (P, T * C, H))      # weight1
    w2 = xavier_normal(k2, (P, H, O))          # weight2
    temb = xavier_normal(kt, (P, H))           # temporal_emb (1,P,1,H) squeezed
    semb = xavier_normal(ks, (N, H))           # spatial_emb  (1,1,N,H) squeezed
    # NOTE: bias1/bias2 are parameters of the PyTorch module but unused in forward.

    fwd = jax.jit(output_layer_forward)
    out = jax.block_until_ready(fwd(data, w1, temb, semb, w2))

    ref = _reference(data, w1, temb, semb, w2)
    assert out.shape == (B, P, N, O), out.shape
    err = float(jnp.max(jnp.abs(out - ref)))
    # Tolerance accounts for bf16 MXU operands (f32 accumulation) and the
    # algebraically exact but reordered f32 summation from the bias folding.
    tol = 5e-2 * float(jnp.max(jnp.abs(ref))) + 2e-8
    assert err <= tol, f"mismatch vs reference: max_err={err} tol={tol}"

    print("KERNEL_OK")
</pallas_src>

<mosaic_0001>
module attributes {stable_mosaic.version = 11 : i64} {
  func.func @_output_layer_kernel(%arg0: i32, %arg1: memref<16x16xbf16, #tpu.memory_space<vmem>>, %arg2: memref<1x32x16xbf16, #tpu.memory_space<vmem>>, %arg3: memref<1x1x32xbf16, #tpu.memory_space<vmem>>, %arg4: memref<1x1x8xf32, #tpu.memory_space<vmem>>, %arg5: memref<1x1x16xf32, #tpu.memory_space<vmem>>) attributes {dimension_semantics = [#tpu.dimension_semantics<parallel>], iteration_bounds = array<i64: 2>, scalar_prefetch = 0 : i64, scratch_operands = 0 : i64, tpu.core_type = #tpu.core_type<tc>, window_params = [{pipeline_mode = #tpu.pipeline_mode<synchronous>, transform_indices = @transform_0, window_bounds = array<i64: 16, 16>}, {transform_indices = @transform_1, window_bounds = array<i64: 1, 32, 16>}, {transform_indices = @transform_2, window_bounds = array<i64: 1, 1, 32>}, {transform_indices = @transform_3, window_bounds = array<i64: 1, 1, 8>}, {transform_indices = @transform_4, window_bounds = array<i64: 1, 1, 16>}]} {
    %c0 = arith.constant 0 : index
    %c0_0 = arith.constant 0 : index
    %c0_1 = arith.constant 0 : index
    %0 = vector.load %arg2[%c0, %c0_0, %c0_1] : memref<1x32x16xbf16, #tpu.memory_space<vmem>>, vector<1x32x16xbf16>
    %1 = vector.shape_cast %0 : vector<1x32x16xbf16> to vector<32x16xbf16>
    %c0_2 = arith.constant 0 : index
    %c0_3 = arith.constant 0 : index
    %2 = vector.load %arg1[%c0_2, %c0_3] : memref<16x16xbf16, #tpu.memory_space<vmem>>, vector<16x16xbf16>
    %cst = arith.constant dense<0.000000e+00> : vector<32x16xf32>
    %3 = tpu.matmul %1, %2, %cst {dimension_numbers = #tpu.dot_dimension_numbers<[1], [0], [0], [1], [0, 0, 1, 1], [], []>} : vector<32x16xbf16>, vector<16x16xbf16>, vector<32x16xf32> -> vector<32x16xf32>
    %cst_4 = arith.constant 0.000000e+00 : f32
    %4 = vector.broadcast %cst_4 : f32 to vector<32x16xf32>
    %5 = arith.maximumf %3, %4 : vector<32x16xf32>
    %c0_5 = arith.constant 0 : index
    %c0_6 = arith.constant 0 : index
    %c0_7 = arith.constant 0 : index
    %6 = vector.load %arg3[%c0_5, %c0_6, %c0_7] : memref<1x1x32xbf16, #tpu.memory_space<vmem>>, vector<1x1x32xbf16>
    %7 = vector.shape_cast %6 : vector<1x1x32xbf16> to vector<1x32xbf16>
    %8 = arith.truncf %5 : vector<32x16xf32> to vector<32x16xbf16>
    %cst_8 = arith.constant dense<0.000000e+00> : vector<1x16xf32>
    %9 = tpu.matmul %7, %8, %cst_8 {dimension_numbers = #tpu.dot_dimension_numbers<[1], [0], [0], [1], [0, 0, 1, 1], [], []>} : vector<1x32xbf16>, vector<32x16xbf16>, vector<1x16xf32> -> vector<1x16xf32>
    %c0_9 = arith.constant 0 : index
    %c0_10 = arith.constant 0 : index
    %c0_11 = arith.constant 0 : index
    %10 = vector.load %arg4[%c0_9, %c0_10, %c0_11] : memref<1x1x8xf32, #tpu.memory_space<vmem>>, vector<1x1x8xf32>
    %11 = vector.shape_cast %10 : vector<1x1x8xf32> to vector<1x8xf32>
    %12 = tpu.concatenate %11, %11 in 1 : vector<1x8xf32>, vector<1x8xf32> -> vector<1x16xf32>
    %13 = arith.addf %9, %12 : vector<1x16xf32>
    %c0_12 = arith.constant 0 : index
    %c0_13 = arith.constant 0 : index
    %c0_14 = arith.constant 0 : index
    %14 = vector.load %arg5[%c0_12, %c0_13, %c0_14] : memref<1x1x16xf32, #tpu.memory_space<vmem>>, vector<1x1x16xf32>
    %15 = vector.shape_cast %14 : vector<1x1x16xf32> to vector<1x16xf32>
    %16 = vector.shape_cast %13 : vector<1x16xf32> to vector<1x1x16xf32>
    tpu.vector_store %arg5[%c0_12, %c0_13, %c0_14], %16 {strides = array<i32>} : memref<1x1x16xf32, #tpu.memory_space<vmem>>, vector<1x1x16xf32>,
    return
  }
  func.func @transform_0(%arg0: i32) -> (i32, i32) {
    %c0_i32 = arith.constant 0 : i32
    %c0_i32_0 = arith.constant 0 : i32
    %c0_i32_1 = arith.constant 0 : i32
    return %c0_i32, %c0_i32_0 : i32, i32
  }
  func.func @transform_1(%arg0: i32) -> (i32, i32, i32) {
    %c0_i32 = arith.constant 0 : i32
    %c0_i32_0 = arith.constant 0 : i32
    %c0_i32_1 = arith.constant 0 : i32
    return %arg0, %c0_i32, %c0_i32_0 : i32, i32, i32
  }
  func.func @transform_2(%arg0: i32) -> (i32, i32, i32) {
    %c0_i32 = arith.constant 0 : i32
    %c0_i32_0 = arith.constant 0 : i32
    %c0_i32_1 = arith.constant 0 : i32
    return %arg0, %c0_i32, %c0_i32_0 : i32, i32, i32
  }
  func.func @transform_3(%arg0: i32) -> (i32, i32, i32) {
    %c0_i32 = arith.constant 0 : i32
    %c0_i32_0 = arith.constant 0 : i32
    %c0_i32_1 = arith.constant 0 : i32
    return %arg0, %c0_i32, %c0_i32_0 : i32, i32, i32
  }
  func.func @transform_4(%arg0: i32) -> (i32, i32, i32) {
    %c0_i32 = arith.constant 0 : i32
    %c0_i32_0 = arith.constant 0 : i32
    %c0_i32_1 = arith.constant 0 : i32
    return %arg0, %c0_i32, %c0_i32_0 : i32, i32, i32
  }
}

</mosaic_0001>

<llo_original>
// kernel: output_layer_forward.1
$region0: #{output_layer_forward.1}
  #allocation0 [shape = 'u32[]', space=smem, size = 0x4, offset = 0x4, fixed_abs, tag = 'smem constant byte address 0x4 - core index']
  #allocation1 [shape = 'u32[144,128]{1,0:T(1,128)}', space=vmem, size = 0x12000, scoped, tag = 'internal scratch']
  %s0 = inlined_call_operand.vmem [shape: bf16[16,16], index: 0, kind: input, shape index: {}]
  %s1 = inlined_call_operand.vmem [shape: bf16[2,32,16], index: 1, kind: input, shape index: {}]
  %s2 = inlined_call_operand.vmem [shape: bf16[2,1,32], index: 2, kind: input, shape index: {}]
  %s3 = inlined_call_operand.vmem [shape: f32[2,1,8], index: 3, kind: input, shape index: {}]
  %s4 = inlined_call_operand.vmem [shape: f32[2,1,16], index: 4, kind: output, shape index: {}]
  %s5 = sld [smem:[#allocation0]]
  $region49: #{output_layer_forward.1} parent=0
    _
  %s7 = ssub.s32 1, %s5
  %s8 = scalar_select 0, %s7, %s5
  loop: start=0, step=1, limit=4
  $region2: #{output_layer_forward.1} parent=0 // loop_pre_header
    _
  $region3: #{output_layer_forward.1} parent=0 // loop_header
    %s10 = sphi 0, %s14
    %p11 = scmp.ge.s32.totalorder %s10, 4
    %s18 = sphi 0, %s18
    %s20 = sphi 0, %s18
    %s21 = sphi 0, %s20
    %s35 = sphi 0, %s21
    %s41 = sphi 0, %s43
    %s44 = sphi 0, %s41
    %s45 = sphi 0, %s44
    %s61 = sphi 0, %s45
    %s67 = sphi 0, %s69
    %s70 = sphi 0, %s67
    %s71 = sphi 0, %s70
    %s87 = sphi 0, %s71
    %s93 = sphi 0, %s95
    %s96 = sphi 0, %s93
    %s97 = sphi 0, %s96
    %s113 = sphi 0, %s97
    %s119 = sphi 0, %s121
    %s122 = sphi 0, %s119
    %s123 = sphi 0, %s122
    %s139 = sphi 0, %s123
  $region4: #{output_layer_forward.1} parent=0 // loop_header_branch
    %13 = sbr.rel (%p11) target = $region8
  $region5: #{output_layer_forward.1} parent=0 // loop_body
    %s15 = ssub.s32 %s10, 1
    %s16 = ssub.s32 %s10, 2
    %s17 = sadd.s32 %s10, 1
    %s19 = sadd.s32 %s18, 1
    %p22 = scmp.eq.s32.totalorder %s10, 1
    %p23 = scmp.ne.s32.totalorder %s18, %s20
    %p24 = scmp.eq.s32.totalorder %s10, 0
    %p25 = por %p23, %p24
    %p26 = scmp.ne.s32.totalorder %s18, %s20
    %p27 = scmp.eq.s32.totalorder %s15, 1
    %p28 = por %p26, %p27
    %p29 = scmp.ne.s32.totalorder %s20, %s21
    %p30 = scmp.eq.s32.totalorder %s15, 0
    %p31 = por %p29, %p30
    %p32 = scmp.ne.s32.totalorder %s20, %s21
    %p33 = scmp.eq.s32.totalorder %s16, 1
    %p34 = por %p32, %p33
    %p36 = scmp.ne.s32.totalorder %s21, %s35
    %p37 = scmp.eq.s32.totalorder %s16, 0
    %p38 = por %p36, %p37
    %s39 = ssub.s32 %s10, %s17
    %p40 = scmp.eq.s32.totalorder %s39, 0
    %s42 = sadd.s32 %s41, 1
    %s43 = scalar_select %p40, %s41, %s42
    %p46 = pneg %p40
    %p47 = scmp.eq.s32.totalorder %s10, 1
    %p48 = por %p46, %p47
    %p49 = scmp.ne.s32.totalorder %s41, %s44
    %p50 = scmp.eq.s32.totalorder %s10, 0
    %p51 = por %p49, %p50
    %p52 = scmp.ne.s32.totalorder %s41, %s44
    %p53 = scmp.eq.s32.totalorder %s15, 1
    %p54 = por %p52, %p53
    %p55 = scmp.ne.s32.totalorder %s44, %s45
    %p56 = scmp.eq.s32.totalorder %s15, 0
    %p57 = por %p55, %p56
    %p58 = scmp.ne.s32.totalorder %s44, %s45
    %p59 = scmp.eq.s32.totalorder %s16, 1
    %p60 = por %p58, %p59
    %p62 = scmp.ne.s32.totalorder %s45, %s61
    %p63 = scmp.eq.s32.totalorder %s16, 0
    %p64 = por %p62, %p63
    %s65 = ssub.s32 %s10, %s17
    %p66 = scmp.eq.s32.totalorder %s65, 0
    %s68 = sadd.s32 %s67, 1
    %s69 = scalar_select %p66, %s67, %s68
    %p72 = pneg %p66
    %p73 = scmp.eq.s32.totalorder %s10, 1
    %p74 = por %p72, %p73
    %p75 = scmp.ne.s32.totalorder %s67, %s70
    %p76 = scmp.eq.s32.totalorder %s10, 0
    %p77 = por %p75, %p76
    %p78 = scmp.ne.s32.totalorder %s67, %s70
    %p79 = scmp.eq.s32.totalorder %s15, 1
    %p80 = por %p78, %p79
    %p81 = scmp.ne.s32.totalorder %s70, %s71
    %p82 = scmp.eq.s32.totalorder %s15, 0
    %p83 = por %p81, %p82
    %p84 = scmp.ne.s32.totalorder %s70, %s71
    %p85 = scmp.eq.s32.totalorder %s16, 1
    %p86 = por %p84, %p85
    %p88 = scmp.ne.s32.totalorder %s71, %s87
    %p89 = scmp.eq.s32.totalorder %s16, 0
    %p90 = por %p88, %p89
    %s91 = ssub.s32 %s10, %s17
    %p92 = scmp.eq.s32.totalorder %s91, 0
    %s94 = sadd.s32 %s93, 1
    %s95 = scalar_select %p92, %s93, %s94
    %p98 = pneg %p92
    %p99 = scmp.eq.s32.totalorder %s10, 1
    %p100 = por %p98, %p99
    %p101 = scmp.ne.s32.totalorder %s93, %s96
    %p102 = scmp.eq.s32.totalorder %s10, 0
    %p103 = por %p101, %p102
    %p104 = scmp.ne.s32.totalorder %s93, %s96
    %p105 = scmp.eq.s32.totalorder %s15, 1
    %p106 = por %p104, %p105
    %p107 = scmp.ne.s32.totalorder %s96, %s97
    %p108 = scmp.eq.s32.totalorder %s15, 0
    %p109 = por %p107, %p108
    %p110 = scmp.ne.s32.totalorder %s96, %s97
    %p111 = scmp.eq.s32.totalorder %s16, 1
    %p112 = por %p110, %p111
    %p114 = scmp.ne.s32.totalorder %s97, %s113
    %p115 = scmp.eq.s32.totalorder %s16, 0
    %p116 = por %p114, %p115
    %s117 = ssub.s32 %s10, %s17
    %p118 = scmp.eq.s32.totalorder %s117, 0
    %s120 = sadd.s32 %s119, 1
    %s121 = scalar_select %p118, %s119, %s120
    %p124 = pneg %p118
    %p125 = scmp.eq.s32.totalorder %s10, 1
    %p126 = por %p124, %p125
    %p127 = scmp.ne.s32.totalorder %s119, %s122
    %p128 = scmp.eq.s32.totalorder %s10, 0
    %p129 = por %p127, %p128
    %p130 = scmp.ne.s32.totalorder %s119, %s122
    %p131 = scmp.eq.s32.totalorder %s15, 1
    %p132 = por %p130, %p131
    %p133 = scmp.ne.s32.totalorder %s122, %s123
    %p134 = scmp.eq.s32.totalorder %s15, 0
    %p135 = por %p133, %p134
    %p136 = scmp.ne.s32.totalorder %s122, %s123
    %p137 = scmp.eq.s32.totalorder %s16, 1
    %p138 = por %p136, %p137
    %p140 = scmp.ne.s32.totalorder %s123, %s139
    %p141 = scmp.eq.s32.totalorder %s16, 0
    %p142 = por %p140, %p141
    %p143 = scmp.le.s32.totalorder 1, %s10
    %p144 = scmp.lt.s32.totalorder %s10, 3
    %p145 = pnand %p143, %p144
    %p146 = pneg %p145
    // Predicated region
    $region9: #{output_layer_forward.1} parent=5 // pred_check
      _
    $region10: #{output_layer_forward.1} parent=5 // pred_check_branch
      %148 = sbr.rel (%p145) target = $region12
    $region11: #{output_layer_forward.1} parent=5 // pred_region
      %s149 = ssub.s32 %s10, 1
      // Predicated region
      $region13: #{output_layer_forward.1} parent=11 // pred_check
        %p150 = pneg %p31
      $region14: #{output_layer_forward.1} parent=11 // pred_check_branch
        %152 = sbr.rel (%p150) target = $region16
      $region15: #{output_layer_forward.1} parent=11 // pred_region
        _
      $region16: #{output_layer_forward.1} parent=11 // pred_fallthru
        _
    $region12: #{output_layer_forward.1} parent=5 // pred_fallthru
      _
    %p153 = scmp.lt.s32.totalorder %s10, 2
    // Predicated region
    $region17: #{output_layer_forward.1} parent=5 // pred_check
      %p154 = pneg %p153
    $region18: #{output_layer_forward.1} parent=5 // pred_check_branch
      %156 = sbr.rel (%p154) target = $region20
    $region19: #{output_layer_forward.1} parent=5 // pred_region
      // Predicated region
      $region21: #{output_layer_forward.1} parent=19 // pred_check
        %p157 = pneg %p51
      $region22: #{output_layer_forward.1} parent=19 // pred_check_branch
        %159 = sbr.rel (%p157) target = $region24
      $region23: #{output_layer_forward.1} parent=19 // pred_region
        %p160 = scmp.lt.s32.totalorder %s10, 1
        %s161 = scalar_select %p160, %s10, 1
        %s162 = smul.addr %s161, 4
        %s163 = smul.addr %s162, 4
        %s164 = scalar_lea.vmem %s1, %s163
      $region24: #{output_layer_forward.1} parent=19 // pred_fallthru
        _
      // Predicated region
      $region25: #{output_layer_forward.1} parent=19 // pred_check
        %p165 = pneg %p77
      $region26: #{output_layer_forward.1} parent=19 // pred_check_branch
        %167 = sbr.rel (%p165) target = $region28
      $region27: #{output_layer_forward.1} parent=19 // pred_region
        %p168 = scmp.lt.s32.totalorder %s10, 1
        %s169 = scalar_select %p168, %s10, 1
        %s170 = scalar_lea.vmem %s2, %s169
      $region28: #{output_layer_forward.1} parent=19 // pred_fallthru
        _
      // Predicated region
      $region29: #{output_layer_forward.1} parent=19 // pred_check
        %p171 = pneg %p103
      $region30: #{output_layer_forward.1} parent=19 // pred_check_branch
        %173 = sbr.rel (%p171) target = $region32
      $region31: #{output_layer_forward.1} parent=19 // pred_region
        %p174 = scmp.lt.s32.totalorder %s10, 1
        %s175 = scalar_select %p174, %s10, 1
        %s176 = scalar_lea.vmem %s3, %s175
      $region32: #{output_layer_forward.1} parent=19 // pred_fallthru
        _
    $region20: #{output_layer_forward.1} parent=5 // pred_fallthru
      _
    %p177 = scmp.le.s32.totalorder 1, %s10
    %p178 = scmp.lt.s32.totalorder %s10, 3
    %p179 = pnand %p177, %p178
    %p180 = pneg %p179
    // Predicated region
    $region33: #{output_layer_forward.1} parent=5 // pred_check
      _
    $region34: #{output_layer_forward.1} parent=5 // pred_check_branch
      %182 = sbr.rel (%p179) target = $region36
    $region35: #{output_layer_forward.1} parent=5 // pred_region
      %s183 = ssub.s32 %s10, 1
      %p184 = pneg %p31
      %p185 = pneg %p28
      %p186 = scmp.lt.s32.totalorder %s15, 1
      %s187 = scalar_select %p186, %s15, 1
      %s188 = smul.addr %s187, 4
      %s189 = smul.addr %s188, 4
      %s190 = scalar_lea.vmem %s1, %s189
      %p191 = pneg %p57
      %p192 = pneg %p54
      %p193 = scmp.lt.s32.totalorder %s15, 1
      %s194 = scalar_select %p193, %s15, 1
      %s195 = scalar_lea.vmem %s2, %s194
      %p196 = pneg %p83
      %p197 = pneg %p80
      %p198 = scmp.lt.s32.totalorder %s15, 1
      %s199 = scalar_select %p198, %s15, 1
      %s200 = scalar_lea.vmem %s3, %s199
      %p201 = pneg %p109
      %p202 = pneg %p106
      %p203 = pneg %p135
      %p204 = pneg %p132
      %p205 = scmp.lt.s32.totalorder %s15, 1
      %s206 = scalar_select %p205, %s15, 1
      %s207 = scalar_lea.vmem %s4, %s206
      %p208 = scmp.lt.s32.totalorder %s15, 1
      %s209 = scalar_select %p208, %s15, 1
      %s210 = smul.addr %s209, 4
      %s211 = smul.addr %s210, 4
      %s212 = scalar_lea.vmem %s1, %s211
      %p213 = scmp.lt.s32.totalorder %s15, 1
      %s214 = scalar_select %p213, %s15, 1
      %s215 = scalar_lea.vmem %s2, %s214
      %p216 = scmp.lt.s32.totalorder %s15, 1
      %s217 = scalar_select %p216, %s15, 1
      %s218 = scalar_lea.vmem %s3, %s217
      %p219 = scmp.lt.s32.totalorder %s15, 1
      %s220 = scalar_select %p219, %s15, 1
      %s221 = scalar_lea.vmem %s4, %s220
      %v223 = vld [vmem:[%s212] sm:$0xf]
      %v224 = vld [vmem:[%s212 + $0x4] sm:$0xf]
      %v225 = vld [vmem:[%s212 + $0x8] sm:$0xf]
      %v226 = vld [vmem:[%s212 + $0xc] sm:$0xf]
      %v227 = vld [vmem:[%s0] sm:$0xf]
      %v228 = vld [vmem:[%s0 + $0x4] sm:$0xf]
      %v233 = vunpack.c.l.b16 %v223
      %v234 = vunpack.c.l.b16 %v224
      %v235 = vunpack.c.l.b16 %v225
      %v236 = vunpack.c.l.b16 %v226
      %v237 = vpack.c.b16 %v234, %v233
      %v238 = vpack.c.b16 %v236, %v235
      %v241 = vunpack.c.l.b16 %v227
      %v242 = vunpack.c.l.b16 %v228
      %v243 = vpack.c.b16 %v242, %v241
      %vm245 = vcmask 130048
      %v247 = vsel %vm245, %v237, 0
      %v250 = vsel %vm245, %v238, 0
      %252 = vmatprep.subr.bf16.mxu0 0
      %253 = vmatpush1.bf16.msra.mxu0 %v243
      %254 = vmatprep.subr.bf16.mxu0 0
      %255 = vmatpush1.bf16.msra.mxu0 0
      %256 = vmatprep.subr.bf16.mxu0 0
      %257 = vmatpush1.bf16.msra.mxu0 0
      %258 = vmatprep.subr.bf16.mxu0 0
      %259 = vmatpush1.bf16.msra.mxu0 0
      %260 = vmatprep.subr.bf16.mxu0 0
      %261 = vmatpush1.bf16.msra.mxu0 0
      %262 = vmatprep.subr.bf16.mxu0 0
      %263 = vmatpush1.bf16.msra.mxu0 0
      %264 = vmatprep.subr.bf16.mxu0 0
      %265 = vmatpush1.bf16.msra.mxu0 0
      %266 = vmatprep.subr.bf16.mxu0 0
      %267 = vmatpush1.bf16.msra.mxu0 0
      %268 = vmatprep.subr.bf16.mxu0 0
      %269 = vmatpush1.bf16.msra.mxu0 0
      %270 = vmatprep.subr.bf16.mxu0 0
      %271 = vmatpush1.bf16.msra.mxu0 0
      %272 = vmatprep.subr.bf16.mxu0 0
      %273 = vmatpush1.bf16.msra.mxu0 0
      %274 = vmatprep.subr.bf16.mxu0 0
      %275 = vmatpush1.bf16.msra.mxu0 0
      %276 = vmatprep.subr.bf16.mxu0 0
      %277 = vmatpush1.bf16.msra.mxu0 0
      %278 = vmatprep.subr.bf16.mxu0 0
      %279 = vmatpush1.bf16.msra.mxu0 0
      %280 = vmatprep.subr.bf16.mxu0 0
      %281 = vmatpush1.bf16.msra.mxu0 0
      %282 = vmatprep.subr.bf16.mxu0 0
      %283 = vmatpush1.bf16.msra.mxu0 0
      %284 = vmatprep.mubr.bf16.mxu0 0
      %285 = vmatmul.mubr.bf16.gmra.mrb[0].mxu0 %v247
      %v286 = vpop.f32.mrb[0].mxu0
      %v287 = vadd.f32 0.0, %v286
      %v288 = vpop.f32.mrb[0].mxu0
      %v289 = vpop.f32.mrb[0].mxu0
      %v290 = vadd.f32 0.0, %v289
      %v291 = vpop.f32.mrb[0].mxu0
      %292 = vmatprep.mubr.bf16.mxu0 0
      %293 = vmatmul.mubr.bf16.gmra.mrb[0].mxu0 %v250
      %v294 = vpop.f32.mrb[0].mxu0
      %v295 = vadd.f32 0.0, %v294
      %v296 = vpop.f32.mrb[0].mxu0
      %v297 = vpop.f32.mrb[0].mxu0
      %v298 = vadd.f32 0.0, %v297
      %v299 = vpop.f32.mrb[0].mxu0
      %300 = vdwg.mxu0
      %v301 = vmax.f32 %v287, 0.0
      %v302 = vmax.f32 %v290, 0.0
      %v303 = vmax.f32 %v295, 0.0
      %v304 = vmax.f32 %v298, 0.0
      %v305 = vld [vmem:[%s215] sm:$0x1]
      %v306 = vpack.c.bf16 %v302, %v301
      %v307 = vpack.c.bf16 %v304, %v303
      %v308 = vld [vmem:[%s218] sm:$0x1]
      %v310 = vlaneseq
      %v311 = vshrl.u32 %v310, 7
      %v312 = vsub.s32 0, %v311
      %v313 = vrot.slane %v308, %v312
      %314 = vrot.lane.b32.xlu0 %v313, 8
      %v315 = vpop.permute.xlu0 %314
      %vm317 = vcmask 64512
      %v318 = vsel %vm317, %v308, %v315
      %vm319 = vcmask 261120
      %v321 = vsel %vm319, %v305, 0
      %323 = vmatprep.subr.bf16.mxu0 0
      %324 = vmatpush1.bf16.msra.mxu0 %v306
      %325 = vmatprep.subr.bf16.mxu0 0
      %326 = vmatpush1.bf16.msra.mxu0 %v307
      %327 = vmatprep.subr.bf16.mxu0 0
      %328 = vmatpush1.bf16.msra.mxu0 0
      %329 = vmatprep.subr.bf16.mxu0 0
      %330 = vmatpush1.bf16.msra.mxu0 0
      %331 = vmatprep.subr.bf16.mxu0 0
      %332 = vmatpush1.bf16.msra.mxu0 0
      %333 = vmatprep.subr.bf16.mxu0 0
      %334 = vmatpush1.bf16.msra.mxu0 0
      %335 = vmatprep.subr.bf16.mxu0 0
      %336 = vmatpush1.bf16.msra.mxu0 0
      %337 = vmatprep.subr.bf16.mxu0 0
      %338 = vmatpush1.bf16.msra.mxu0 0
      %339 = vmatprep.subr.bf16.mxu0 0
      %340 = vmatpush1.bf16.msra.mxu0 0
      %341 = vmatprep.subr.bf16.mxu0 0
      %342 = vmatpush1.bf16.msra.mxu0 0
      %343 = vmatprep.subr.bf16.mxu0 0
      %344 = vmatpush1.bf16.msra.mxu0 0
      %345 = vmatprep.subr.bf16.mxu0 0
      %346 = vmatpush1.bf16.msra.mxu0 0
      %347 = vmatprep.subr.bf16.mxu0 0
      %348 = vmatpush1.bf16.msra.mxu0 0
      %349 = vmatprep.subr.bf16.mxu0 0
      %350 = vmatpush1.bf16.msra.mxu0 0
      %351 = vmatprep.subr.bf16.mxu0 0
      %352 = vmatpush1.bf16.msra.mxu0 0
      %353 = vmatprep.subr.bf16.mxu0 0
      %354 = vmatpush1.bf16.msra.mxu0 0
      %355 = vmatprep.mubr.bf16.mxu0 0
      %356 = vmatmul.mubr.bf16.gmra.mrb[0].mxu0 %v321
      %v357 = vpop.f32.mrb[0].mxu0
      %v358 = vadd.f32 %v318, %v357
      %v359 = vpop.f32.mrb[0].mxu0
      %v360 = vpop.f32.mrb[0].mxu0
      %v361 = vpop.f32.mrb[0].mxu0
      %362 = vdwg.mxu0
      %vm363 = vcmask 122880
      %364 = vst.msk [vmem:[%s221] sm:$0x1] %vm363, %v358
      %p365 = scmp.lt.s32.totalorder %s15, 1
      %s366 = scalar_select %p365, %s15, 1
      %s367 = scalar_lea.vmem %s4, %s366
      // Predicated region
      $region37: #{output_layer_forward.1} parent=35 // pred_check
        %p368 = pneg %p132
      $region38: #{output_layer_forward.1} parent=35 // pred_check_branch
        %370 = sbr.rel (%p368) target = $region40
      $region39: #{output_layer_forward.1} parent=35 // pred_region
        _
      $region40: #{output_layer_forward.1} parent=35 // pred_fallthru
        _
    $region36: #{output_layer_forward.1} parent=5 // pred_fallthru
      _
    %p371 = scmp.le.s32.totalorder 2, %s10
    // Predicated region
    $region41: #{output_layer_forward.1} parent=5 // pred_check
      %p372 = pneg %p371
    $region42: #{output_layer_forward.1} parent=5 // pred_check_branch
      %374 = sbr.rel (%p372) target = $region44
    $region43: #{output_layer_forward.1} parent=5 // pred_region
      %s375 = ssub.s32 %s10, 2
      // Predicated region
      $region45: #{output_layer_forward.1} parent=43 // pred_check
        %p376 = pneg %p138
      $region46: #{output_layer_forward.1} parent=43 // pred_check_branch
        %378 = sbr.rel (%p376) target = $region48
      $region47: #{output_layer_forward.1} parent=43 // pred_region
        %p379 = scmp.lt.s32.totalorder %s16, 1
        %s380 = scalar_select %p379, %s16, 1
        %s381 = scalar_lea.vmem %s4, %s380
      $region48: #{output_layer_forward.1} parent=43 // pred_fallthru
        _
    $region44: #{output_layer_forward.1} parent=5 // pred_fallthru
      _
  $region6: #{output_layer_forward.1} parent=0 // loop_footer
    %s14 = sadd.s32 1, %s10
  $region7: #{output_layer_forward.1} parent=0 // loop_footer_branch
    %9 = sbr.rel target = $region3
  $region8: #{output_layer_forward.1} parent=0 // loop_exit
    _

</llo_original>
